<compile_context>
chip_gen: v5e
topology: v5e:2x2
jax: 0.10.0
libtpu: 0.0.40
codegen_flags: <defaults>
</compile_context>

<pallas_src>
import functools

import jax
import jax.numpy as jnp
from jax.experimental import pallas as pl
from jax.experimental.pallas import tpu as pltpu


def _round_up(x: int, m: int) -> int:
    return ((x + m - 1) // m) * m


def mlp_kernel(x_ref, w1_ref, b1_ref, w2_ref, b2_ref, o_ref):
    # hidden = relu(x @ W1 + b1), f32 accumulation on the MXU.
    x = x_ref[...].astype(w1_ref.dtype)      # no-op on f32 path; pack on bf16 path
    h = jnp.dot(x, w1_ref[...], preferred_element_type=jnp.float32)
    h = jnp.maximum(h + b1_ref[...], 0.0)    # (1, Hp) bias broadcasts over rows
    # out = hidden @ W2 + b2 (cast of h is a no-op on the f32 path)
    out = jnp.dot(h.astype(w2_ref.dtype), w2_ref[...],
                  preferred_element_type=jnp.float32)
    o_ref[...] = (out + b2_ref[...]).astype(o_ref.dtype)


def prepare_params(w1, b1, w2, b2, *, compute_dtype=None):
    """One-time (out of the per-call path) prep of the resident weights.

    Pads the hidden dim to a multiple of 128 (zero weight columns + zero bias
    -> relu -> 0; zero W2 rows contribute nothing, so results are exact) and
    optionally pre-casts the tiny weights to compute_dtype. The output dim O
    is left unpadded. x is never touched here.
    """
    F, H = w1.shape
    Hp = _round_up(H, 128)
    w1p = jnp.pad(w1, ((0, 0), (0, Hp - H)))
    b1p = jnp.pad(b1, ((0, 0), (0, Hp - H)))
    w2p = jnp.pad(w2, ((0, Hp - H), (0, 0)))
    b2p = b2
    if compute_dtype is not None:
        # Only the VMEM-resident weights are cast; biases / accumulation stay f32.
        # NOTE: bf16 compute deviates from the f32 reference beyond ~1e-5.
        w1p = w1p.astype(compute_dtype)
        w2p = w2p.astype(compute_dtype)
    return w1p, b1p, w2p, b2p


@functools.partial(jax.jit, static_argnames=("tile_n",))
def mlp_net(x, w1p, b1p, w2p, b2p, *, tile_n: int = 4096):
    """Pallas implementation of mlpNet.forward (hg is unused by the forward).

    x:   [N, F] float32
    w1p: [F, Hp], b1p: [1, Hp]   (Linear(F -> H), transposed + H padded to 128)
    w2p: [Hp, O], b2p: [1, O]    (Linear(H -> O), transposed, O unpadded)
    """
    N, F = x.shape
    Hp = w1p.shape[1]
    O = w2p.shape[1]

    # Row tile: sublane-aligned, and clamped so the grid has >= 2 steps whenever
    # N allows it (lets dimension_semantics=("parallel",) actually shard across
    # v7x's two TensorCores; harmless ~0.35us extra step on v5e/v6e).
    tile_n = max(8, min(tile_n, _round_up(pl.cdiv(N, 2), 8)))
    grid = (pl.cdiv(N, tile_n),)

    # Footprint-derived scoped-VMEM limit: double-buffered x/out tiles + the
    # (also double-buffered) resident weights + slack.  Cap at 48 MiB so it
    # fits v7x's 64 MiB physical VMEM; v5e/v6e have 128 MiB so this is safe.
    w_bytes = (w1p.size * w1p.dtype.itemsize + b1p.size * b1p.dtype.itemsize
               + w2p.size * w2p.dtype.itemsize + b2p.size * b2p.dtype.itemsize)
    stream_bytes = tile_n * (F * x.dtype.itemsize + O * 4)
    vmem_limit = int(min(max(2 * (w_bytes + stream_bytes) + (8 << 20), 16 << 20),
                         48 << 20))

    cost = pl.CostEstimate(
        flops=2 * N * (F * Hp + Hp * O),
        transcendentals=0,
        bytes_accessed=N * (F * x.dtype.itemsize + O * 4) + w_bytes,
    )

    out = pl.pallas_call(
        mlp_kernel,
        out_shape=jax.ShapeDtypeStruct((N, O), jnp.float32),
        grid=grid,
        in_specs=[
            # x: tiled over rows, streamed (double-buffered) through VMEM.
            pl.BlockSpec((tile_n, F), lambda i: (i, 0)),
            # weights / biases: constant block index -> VMEM-resident, no re-DMA.
            pl.BlockSpec((F, Hp), lambda i: (0, 0)),
            pl.BlockSpec((1, Hp), lambda i: (0, 0)),
            pl.BlockSpec((Hp, O), lambda i: (0, 0)),
            pl.BlockSpec((1, O), lambda i: (0, 0)),
        ],
        # O equals the full last dim of the (N, O) output -> legal un-padded block.
        out_specs=pl.BlockSpec((tile_n, O), lambda i: (i, 0)),
        compiler_params=pltpu.CompilerParams(
            dimension_semantics=("parallel",),
            vmem_limit_bytes=vmem_limit,
        ),
        cost_estimate=cost,
    )(x, w1p, b1p, w2p, b2p)

    return out


def init_params(key, n_feature, n_hidden, n_output):
    # Deterministic init mimicking torch.nn.Linear default (uniform +-1/sqrt(fan_in)).
    k1, k2, k3, k4 = jax.random.split(key, 4)
    lim1 = 1.0 / jnp.sqrt(jnp.float32(n_feature))
    lim2 = 1.0 / jnp.sqrt(jnp.float32(n_hidden))
    # stored as [in, out] (already transposed relative to torch's [out, in])
    w1 = jax.random.uniform(k1, (n_feature, n_hidden), jnp.float32, -lim1, lim1)
    b1 = jax.random.uniform(k2, (1, n_hidden), jnp.float32, -lim1, lim1)
    w2 = jax.random.uniform(k3, (n_hidden, n_output), jnp.float32, -lim2, lim2)
    b2 = jax.random.uniform(k4, (1, n_output), jnp.float32, -lim2, lim2)
    return w1, b1, w2, b2


def _ref(x, w1, b1, w2, b2):
    return jnp.maximum(x @ w1 + b1, 0.0) @ w2 + b2


if __name__ == "__main__":
    # Small shapes implied by the module: N nodes with n_feature features.
    n_feature, n_hidden, n_output = 16, 32, 8

    key = jax.random.PRNGKey(0)
    kx, kp, kx2, kx3 = jax.random.split(key, 4)
    w1, b1, w2, b2 = init_params(kp, n_feature, n_hidden, n_output)
    # Weight padding / (optional) cast is hoisted out of the per-call path.
    w1p, b1p, w2p, b2p = prepare_params(w1, b1, w2, b2)

    # --- case 1: tiny N (single grid step) ---
    N = 8
    x = jax.random.normal(kx, (N, n_feature), jnp.float32)
    # hg (Hypergraph) is ignored by mlpNet.forward, so it is not modeled here.
    out = jax.block_until_ready(mlp_net(x, w1p, b1p, w2p, b2p))
    assert out.shape == (N, n_output)
    assert jnp.allclose(out, _ref(x, w1, b1, w2, b2), atol=1e-5, rtol=1e-5)

    # --- case 2: multiple pipelined row tiles ---
    N2 = 48
    x2 = jax.random.normal(kx2, (N2, n_feature), jnp.float32)
    out2 = jax.block_until_ready(mlp_net(x2, w1p, b1p, w2p, b2p, tile_n=16))
    assert out2.shape == (N2, n_output)
    assert jnp.allclose(out2, _ref(x2, w1, b1, w2, b2), atol=1e-5, rtol=1e-5)

    # --- case 3: ragged last block (N not a multiple of tile_n, cdiv grid) ---
    N3 = 50
    x3 = jax.random.normal(kx3, (N3, n_feature), jnp.float32)
    out3 = jax.block_until_ready(mlp_net(x3, w1p, b1p, w2p, b2p, tile_n=16))
    assert out3.shape == (N3, n_output)
    assert jnp.allclose(out3, _ref(x3, w1, b1, w2, b2), atol=1e-5, rtol=1e-5)

    # TODO(synk): at these demo sizes a standalone pallas_call is pure launch
    # overhead; it only pays off once N is in the thousands (tile_n ~4096).
    print("KERNEL_OK")
</pallas_src>

<mosaic_0001>
module attributes {stable_mosaic.version = 11 : i64} {
  func.func @mlp_kernel(%arg0: i32, %arg1: memref<8x16xf32, #tpu.memory_space<vmem>>, %arg2: memref<16x128xf32, #tpu.memory_space<vmem>>, %arg3: memref<1x128xf32, #tpu.memory_space<vmem>>, %arg4: memref<128x8xf32, #tpu.memory_space<vmem>>, %arg5: memref<1x8xf32, #tpu.memory_space<vmem>>, %arg6: memref<8x8xf32, #tpu.memory_space<vmem>>) attributes {dimension_semantics = [#tpu.dimension_semantics<parallel>], iteration_bounds = array<i64: 1>, scalar_prefetch = 0 : i64, scratch_operands = 0 : i64, tpu.core_type = #tpu.core_type<tc>, window_params = [{transform_indices = @transform_0, window_bounds = array<i64: 8, 16>}, {pipeline_mode = #tpu.pipeline_mode<synchronous>, transform_indices = @transform_1, window_bounds = array<i64: 16, 128>}, {pipeline_mode = #tpu.pipeline_mode<synchronous>, transform_indices = @transform_2, window_bounds = array<i64: 1, 128>}, {pipeline_mode = #tpu.pipeline_mode<synchronous>, transform_indices = @transform_3, window_bounds = array<i64: 128, 8>}, {pipeline_mode = #tpu.pipeline_mode<synchronous>, transform_indices = @transform_4, window_bounds = array<i64: 1, 8>}, {transform_indices = @transform_5, window_bounds = array<i64: 8, 8>}]} {
    %c0 = arith.constant 0 : index
    %c0_0 = arith.constant 0 : index
    %0 = vector.load %arg1[%c0, %c0_0] : memref<8x16xf32, #tpu.memory_space<vmem>>, vector<8x16xf32>
    %c0_1 = arith.constant 0 : index
    %c0_2 = arith.constant 0 : index
    %1 = vector.load %arg2[%c0_1, %c0_2] : memref<16x128xf32, #tpu.memory_space<vmem>>, vector<16x128xf32>
    %cst = arith.constant dense<0.000000e+00> : vector<8x128xf32>
    %2 = tpu.matmul %0, %1, %cst {dimension_numbers = #tpu.dot_dimension_numbers<[1], [0], [0], [1], [0, 0, 1, 1], [], []>} : vector<8x16xf32>, vector<16x128xf32>, vector<8x128xf32> -> vector<8x128xf32>
    %c0_3 = arith.constant 0 : index
    %c0_4 = arith.constant 0 : index
    %3 = vector.load %arg3[%c0_3, %c0_4] : memref<1x128xf32, #tpu.memory_space<vmem>>, vector<1x128xf32>
    %4 = vector.broadcast %3 : vector<1x128xf32> to vector<8x128xf32>
    %5 = arith.addf %2, %4 : vector<8x128xf32>
    %cst_5 = arith.constant 0.000000e+00 : f32
    %6 = vector.broadcast %cst_5 : f32 to vector<8x128xf32>
    %7 = arith.maximumf %5, %6 : vector<8x128xf32>
    %c0_6 = arith.constant 0 : index
    %c0_7 = arith.constant 0 : index
    %8 = vector.load %arg4[%c0_6, %c0_7] : memref<128x8xf32, #tpu.memory_space<vmem>>, vector<128x8xf32>
    %cst_8 = arith.constant dense<0.000000e+00> : vector<8x8xf32>
    %9 = tpu.matmul %7, %8, %cst_8 {dimension_numbers = #tpu.dot_dimension_numbers<[1], [0], [0], [1], [0, 0, 1, 1], [], []>} : vector<8x128xf32>, vector<128x8xf32>, vector<8x8xf32> -> vector<8x8xf32>
    %c0_9 = arith.constant 0 : index
    %c0_10 = arith.constant 0 : index
    %10 = vector.load %arg5[%c0_9, %c0_10] : memref<1x8xf32, #tpu.memory_space<vmem>>, vector<1x8xf32>
    %11 = vector.broadcast %10 : vector<1x8xf32> to vector<8x8xf32>
    %12 = arith.addf %9, %11 : vector<8x8xf32>
    %c0_11 = arith.constant 0 : index
    %c0_12 = arith.constant 0 : index
    %13 = vector.load %arg6[%c0_11, %c0_12] : memref<8x8xf32, #tpu.memory_space<vmem>>, vector<8x8xf32>
    tpu.vector_store %arg6[%c0_11, %c0_12], %12 {strides = array<i32>} : memref<8x8xf32, #tpu.memory_space<vmem>>, vector<8x8xf32>,
    return
  }
  func.func @transform_0(%arg0: i32) -> (i32, i32) {
    %c0_i32 = arith.constant 0 : i32
    %c0_i32_0 = arith.constant 0 : i32
    return %arg0, %c0_i32 : i32, i32
  }
  func.func @transform_1(%arg0: i32) -> (i32, i32) {
    %c0_i32 = arith.constant 0 : i32
    %c0_i32_0 = arith.constant 0 : i32
    %c0_i32_1 = arith.constant 0 : i32
    return %c0_i32, %c0_i32_0 : i32, i32
  }
  func.func @transform_2(%arg0: i32) -> (i32, i32) {
    %c0_i32 = arith.constant 0 : i32
    %c0_i32_0 = arith.constant 0 : i32
    %c0_i32_1 = arith.constant 0 : i32
    return %c0_i32, %c0_i32_0 : i32, i32
  }
  func.func @transform_3(%arg0: i32) -> (i32, i32) {
    %c0_i32 = arith.constant 0 : i32
    %c0_i32_0 = arith.constant 0 : i32
    %c0_i32_1 = arith.constant 0 : i32
    return %c0_i32, %c0_i32_0 : i32, i32
  }
  func.func @transform_4(%arg0: i32) -> (i32, i32) {
    %c0_i32 = arith.constant 0 : i32
    %c0_i32_0 = arith.constant 0 : i32
    %c0_i32_1 = arith.constant 0 : i32
    return %c0_i32, %c0_i32_0 : i32, i32
  }
  func.func @transform_5(%arg0: i32) -> (i32, i32) {
    %c0_i32 = arith.constant 0 : i32
    %c0_i32_0 = arith.constant 0 : i32
    return %arg0, %c0_i32 : i32, i32
  }
}

</mosaic_0001>

<llo_original>
// kernel: mlp_net.1
$region0: #{mlp_net.1}
  #allocation0 [shape = 'u32[]', space=smem, size = 0x4, offset = 0x4, fixed_abs, tag = 'smem constant byte address 0x4 - core index']
  #allocation1 [shape = 'u32[72,128]{1,0:T(1,128)}', space=vmem, size = 0x9000, scoped, tag = 'internal scratch']
  %s0 = inlined_call_operand.vmem [shape: f32[8,16], index: 0, kind: input, shape index: {}]
  %s1 = inlined_call_operand.vmem [shape: f32[16,128], index: 1, kind: input, shape index: {}]
  %s2 = inlined_call_operand.vmem [shape: f32[1,128], index: 2, kind: input, shape index: {}]
  %s3 = inlined_call_operand.vmem [shape: f32[128,8], index: 3, kind: input, shape index: {}]
  %s4 = inlined_call_operand.vmem [shape: f32[1,8], index: 4, kind: input, shape index: {}]
  %s5 = inlined_call_operand.hbm [shape: f32[8,8], index: 5, kind: output, shape index: {}]
  %s6 = sld [smem:[#allocation0]]
  $region30: #{mlp_net.1} parent=0
    _
  %s8 = ssub.s32 1, %s6
  %s9 = scalar_select 0, %s8, %s6
  $region1: #{mlp_net.1} parent=0
    #allocation2 [shape = 'u8[4096]{0}', space=vmem, size = 0x1000, scoped, tag = 'output window, operand 0, single buffered']
    #allocation3 [shape = 's32[1]{0}', space=sflag, size = 0x4, scoped, tag = 'scoped memory for mlp_net.1']
    %10 = vsyncpa [#allocation3], 0
    // Predicated region
    $region2: #{mlp_net.1} parent=1 // pred_check
      _
    $region3: #{mlp_net.1} parent=1 // pred_check_branch
      %12 = sbr.rel (0) target = $region5
    $region4: #{mlp_net.1} parent=1 // pred_region
      _
    $region5: #{mlp_net.1} parent=1 // pred_fallthru
      _
    // Predicated region
    $region6: #{mlp_net.1} parent=1 // pred_check
      _
    $region7: #{mlp_net.1} parent=1 // pred_check_branch
      %14 = sbr.rel (0) target = $region9
    $region8: #{mlp_net.1} parent=1 // pred_region
      _
    $region9: #{mlp_net.1} parent=1 // pred_fallthru
      _
    // Predicated region
    $region10: #{mlp_net.1} parent=1 // pred_check
      _
    $region11: #{mlp_net.1} parent=1 // pred_check_branch
      %16 = sbr.rel (0) target = $region13
    $region12: #{mlp_net.1} parent=1 // pred_region
      _
    $region13: #{mlp_net.1} parent=1 // pred_fallthru
      _
    // Predicated region
    $region14: #{mlp_net.1} parent=1 // pred_check
      _
    $region15: #{mlp_net.1} parent=1 // pred_check_branch
      %18 = sbr.rel (0) target = $region17
    $region16: #{mlp_net.1} parent=1 // pred_region
      _
    $region17: #{mlp_net.1} parent=1 // pred_fallthru
      _
    // Predicated region
    $region18: #{mlp_net.1} parent=1 // pred_check
      _
    $region19: #{mlp_net.1} parent=1 // pred_check_branch
      %20 = sbr.rel (0) target = $region21
    $region20: #{mlp_net.1} parent=1 // pred_region
      _
    $region21: #{mlp_net.1} parent=1 // pred_fallthru
      _
    %v21 = vld [vmem:[%s0] sm:$0xff]
    %v22 = vld [vmem:[%s1] sm:$0xff]
    %v23 = vld [vmem:[%s1 + $0x8] sm:$0xff]
    %v24 = vld [vmem:[%s2] sm:$0x1]
    %v26 = vperm.slane %v24, 0
    %vm28 = vcmask 130048
    %v30 = vsel %vm28, %v21, 0
    %32 = vmatpush.msra.mxu0 0.0
    %33 = vmatpush.msra.mxu0 0.0
    %34 = vmatpush.msra.mxu0 0.0
    %35 = vmatpush.msra.mxu0 0.0
    %36 = vmatpush.msra.mxu0 0.0
    %37 = vmatpush.msra.mxu0 0.0
    %38 = vmatpush.msra.mxu0 0.0
    %39 = vmatpush.msra.mxu0 0.0
    %40 = vmatpush.msra.mxu0 0.0
    %41 = vmatpush.msra.mxu0 0.0
    %42 = vmatpush.msra.mxu0 0.0
    %43 = vmatpush.msra.mxu0 0.0
    %44 = vmatpush.msra.mxu0 0.0
    %45 = vmatpush.msra.mxu0 0.0
    %46 = vmatpush.msra.mxu0 %v23
    %47 = vmatpush.msra.mxu0 %v22
    %48 = vmatmul.f32.gmra.mxu0 %v30
    %v49 = vpop.f32.mrf.mxu0
    %v50 = vadd.f32 %v26, %v49
    %51 = vdwg.mxu0
    %v52 = vmax.f32 %v50, 0.0
    %v53 = vld [vmem:[%s3] sm:$0xff]
    %v54 = vld [vmem:[%s3 + $0x8] sm:$0xff]
    %v55 = vld [vmem:[%s3 + $0x10] sm:$0xff]
    %v56 = vld [vmem:[%s3 + $0x18] sm:$0xff]
    %v57 = vld [vmem:[%s3 + $0x20] sm:$0xff]
    %v58 = vld [vmem:[%s3 + $0x28] sm:$0xff]
    %v59 = vld [vmem:[%s3 + $0x30] sm:$0xff]
    %v60 = vld [vmem:[%s3 + $0x38] sm:$0xff]
    %v61 = vld [vmem:[%s3 + $0x40] sm:$0xff]
    %v62 = vld [vmem:[%s3 + $0x48] sm:$0xff]
    %v63 = vld [vmem:[%s3 + $0x50] sm:$0xff]
    %v64 = vld [vmem:[%s3 + $0x58] sm:$0xff]
    %v65 = vld [vmem:[%s3 + $0x60] sm:$0xff]
    %v66 = vld [vmem:[%s3 + $0x68] sm:$0xff]
    %v67 = vld [vmem:[%s3 + $0x70] sm:$0xff]
    %v68 = vld [vmem:[%s3 + $0x78] sm:$0xff]
    %v69 = vld [vmem:[%s4] sm:$0x1]
    %v71 = vperm.slane %v69, 0
    %73 = vmatpush.msra.mxu0 %v68
    %74 = vmatpush.msra.mxu0 %v67
    %75 = vmatpush.msra.mxu0 %v66
    %76 = vmatpush.msra.mxu0 %v65
    %77 = vmatpush.msra.mxu0 %v64
    %78 = vmatpush.msra.mxu0 %v63
    %79 = vmatpush.msra.mxu0 %v62
    %80 = vmatpush.msra.mxu0 %v61
    %81 = vmatpush.msra.mxu0 %v60
    %82 = vmatpush.msra.mxu0 %v59
    %83 = vmatpush.msra.mxu0 %v58
    %84 = vmatpush.msra.mxu0 %v57
    %85 = vmatpush.msra.mxu0 %v56
    %86 = vmatpush.msra.mxu0 %v55
    %87 = vmatpush.msra.mxu0 %v54
    %88 = vmatpush.msra.mxu0 %v53
    %89 = vmatmul.f32.gmra.mxu0 %v52
    %v90 = vpop.f32.mrf.mxu0
    %v91 = vadd.f32 %v71, %v90
    %92 = vdwg.mxu0
    %vm93 = vcmask 64512
    %94 = vst.msk [vmem:[#allocation2] sm:$0xff] %vm93, %v91
    // Predicated region
    $region22: #{mlp_net.1} parent=1 // pred_check
      _
    $region23: #{mlp_net.1} parent=1 // pred_check_branch
      %96 = sbr.rel (0) target = $region25
    $region24: #{mlp_net.1} parent=1 // pred_region
      %98 = vsyncadd [#allocation3], 0
      %s100 = sshll.u32 [#allocation2], 4
      %s101 = int_to_ptr.vmem [resolvable:$true] %s100
      %s102 = sshll.u32 %s5, 4
      %s103 = int_to_ptr.hbm [resolvable:$true] %s102
      %105 = dma.vmem_to_hbm [thread:$0]  %s101, 128, %s103, [#allocation3]
    $region25: #{mlp_net.1} parent=1 // pred_fallthru
      _
    // Predicated region
    $region26: #{mlp_net.1} parent=1 // pred_check
      _
    $region27: #{mlp_net.1} parent=1 // pred_check_branch
      %107 = sbr.rel (0) target = $region29
    $region28: #{mlp_net.1} parent=1 // pred_region
      %109 = dma.done [#allocation3], 128
    $region29: #{mlp_net.1} parent=1 // pred_fallthru
      _
    %110 = vsyncpa [#allocation3], 1

</llo_original>
